<compile_context>
chip_gen: v5e
topology: v5e:2x2
jax: 0.10.0
libtpu: 0.0.40
codegen_flags: <defaults>
</compile_context>

<pallas_src>
import functools
import math

import jax
import jax.numpy as jnp
from jax import lax
from jax.experimental import pallas as pl
from jax.experimental.pallas import tpu as pltpu

_F32 = 4  # bytes


# ---------------------------------------------------------------------------
# Kernels
# ---------------------------------------------------------------------------
def _ln_ff_body(x_ref, w1_ref, b1_ref, w2_ref, eps):
    """normalize(x) -> (x_hat @ W1' + b1') -> ReLU -> (@ W2'), f32 accumulation.

    gamma/beta are pre-folded into W1'/b1' by the wrapper, so only the
    mean/rsqrt normalization happens here (f32 on the VPU).  Both matmuls run
    on the MXU in the weights' dtype (bf16 by default) with f32 accumulation.
    """
    x = x_ref[...].astype(jnp.float32)
    mean = jnp.mean(x, axis=-1, keepdims=True)
    xc = x - mean
    var = jnp.mean(xc * xc, axis=-1, keepdims=True)
    ln = (xc * lax.rsqrt(var + eps)).astype(w1_ref.dtype)  # cast before dot 1

    h = jnp.dot(ln, w1_ref[...], preferred_element_type=jnp.float32)
    h = jnp.maximum(h + b1_ref[...], 0.0).astype(w2_ref.dtype)  # cast before dot 2
    return jnp.dot(h, w2_ref[...], preferred_element_type=jnp.float32)


def _transition_kernel(x_ref, w1_ref, b1_ref, w2_ref, b2_ref, o_ref, *, eps):
    # Weights fully resident (nh == 1): compute and store directly.
    out = _ln_ff_body(x_ref, w1_ref, b1_ref, w2_ref, eps) + b2_ref[...]
    o_ref[...] = out.astype(o_ref.dtype)


def _transition_kernel_htiled(x_ref, w1_ref, b1_ref, w2_ref, b2_ref, o_ref,
                              acc_ref, *, eps):
    # H (intermediate) axis tiled: accumulate the second matmul in f32 scratch.
    # LN is recomputed per H step — negligible next to the two matmuls.
    k = pl.program_id(1)

    @pl.when(k == 0)
    def _():
        acc_ref[...] = jnp.zeros_like(acc_ref)

    acc_ref[...] += _ln_ff_body(x_ref, w1_ref, b1_ref, w2_ref, eps)

    @pl.when(k == pl.num_programs(1) - 1)
    def _():
        o_ref[...] = (acc_ref[...] + b2_ref[...]).astype(o_ref.dtype)


# ---------------------------------------------------------------------------
# Single-buffering support probe (pipeline_mode=pl.Buffered(1))
# ---------------------------------------------------------------------------
_BUFFERED_OK = None


def _probe_kernel(x_ref, o_ref):
    o_ref[...] = x_ref[...]


def _single_buffer_supported():
    """One-time tiny compile to check pipeline_mode=pl.Buffered(1) support."""
    global _BUFFERED_OK
    if _BUFFERED_OK is None:
        try:
            fn = pl.pallas_call(
                _probe_kernel,
                out_shape=jax.ShapeDtypeStruct((8, 128), jnp.float32),
                grid=(1,),
                in_specs=[pl.BlockSpec((8, 128), lambda i: (0, 0),
                                       pipeline_mode=pl.Buffered(1))],
                out_specs=pl.BlockSpec((8, 128), lambda i: (0, 0)),
            )
            jax.jit(fn).lower(jnp.zeros((8, 128), jnp.float32)).compile()
            _BUFFERED_OK = True
        except Exception:
            _BUFFERED_OK = False
    return _BUFFERED_OK


# ---------------------------------------------------------------------------
# Tiling / VMEM sizing helpers (generation aware)
# ---------------------------------------------------------------------------
def _round_up(x, n):
    return ((x + n - 1) // n) * n


def _tpu_vmem_bytes():
    try:
        return int(pltpu.get_tpu_info().vmem_capacity_bytes)
    except Exception:
        return 64 << 20  # be conservative (v7x-sized) if query unavailable


def _vmem_config():
    cap = _tpu_vmem_bytes()
    if cap >= (96 << 20):          # v5e / v6e: 128 MiB physical VMEM
        return 56 << 20, 100 << 20, 2048   # budget, vmem_limit cap, max tile_m
    # v7x: 64 MiB physical VMEM — leave compiler scratch/semaphore headroom
    return 36 << 20, 48 << 20, 1024


def _vmem_estimate(tile_m, tile_h, c, x_bytes, w_bytes, weight_bufs, out_bytes):
    act_io = 2 * tile_m * c * x_bytes + 2 * tile_m * c * out_bytes   # in/out, 2-buf
    weights = weight_bufs * ((c * tile_h + tile_h * c) * w_bytes + tile_h * _F32)
    weights += c * _F32                                              # b2 (f32)
    acc = tile_m * c * _F32                                          # htiled scratch
    live = tile_m * (c + tile_h) * _F32 + tile_m * (c + tile_h) * w_bytes
    return act_io + weights + acc + live


def _choose_tiles(m, c, h, x_bytes, w_bytes, out_bytes, budget, max_tile_m,
                  resident_bufs):
    pack = 16 if x_bytes == 2 else 8

    def fits(tm, th, bufs):
        return _vmem_estimate(tm, th, c, x_bytes, w_bytes, bufs, out_bytes) <= budget

    # --- H tiling: only when fully-resident weights would crush tile_m. ---
    tile_h = h
    probe_m = max(min(m, 256), pack)
    if not fits(probe_m, tile_h, resident_bufs):
        th = h
        while th % 2 == 0 and (th // 2) % 128 == 0:
            th //= 2
            if fits(probe_m, th, 2):
                break
        if th < h and h % th == 0:
            tile_h = th
    weight_bufs = resident_bufs if tile_h == h else 2

    # --- M (row) tiling. ---
    if m <= max_tile_m:
        tile_m = m
        if m >= 2 * pack:
            # >=2 grid steps along the parallel axis so v7x's two TensorCores
            # both get work; negligible cost on single-TC v5e/v6e.
            tile_m = _round_up(-(-m // 2), pack)
    else:
        tile_m = max_tile_m
    while tile_m > pack and not fits(tile_m, tile_h, weight_bufs):
        tile_m = max(pack, _round_up(tile_m // 2, pack))
    return tile_m, tile_h


# ---------------------------------------------------------------------------
# Wrapper
# ---------------------------------------------------------------------------
@functools.partial(jax.jit, static_argnames=("compute_dtype", "eps", "tile_m",
                                              "tile_h", "single_buffer"))
def _transition_impl(act, ln_gamma, ln_beta, w1, b1, w2, b2, *,
                     compute_dtype, eps, tile_m, tile_h, single_buffer):
    *lead, c = act.shape
    c_w, h = w1.shape
    assert c == c_w and w2.shape == (h, c), (act.shape, w1.shape, w2.shape)

    m = 1
    for d in lead:
        m *= d
    if m == 0:
        return jnp.zeros((*lead, c), dtype=act.dtype)

    x2 = act.reshape(m, c)

    # Fold LayerNorm affine into the first linear (exact, computed in f32):
    #   (x_hat*gamma + beta) @ W1 + b1 == x_hat @ (gamma[:,None]*W1) + (beta@W1 + b1)
    w1_f32 = w1.astype(jnp.float32)
    w1c = (ln_gamma.astype(jnp.float32)[:, None] * w1_f32).astype(compute_dtype)
    b1f = (jnp.dot(ln_beta.astype(jnp.float32), w1_f32,
                   precision=lax.Precision.HIGHEST)
           + b1.astype(jnp.float32)).reshape(1, h)
    w2c = w2.astype(compute_dtype)
    b2f = b2.astype(jnp.float32).reshape(1, c)

    x_bytes = jnp.dtype(act.dtype).itemsize
    w_bytes = jnp.dtype(compute_dtype).itemsize
    out_bytes = x_bytes

    budget, limit_cap, max_tile_m = _vmem_config()
    resident_bufs = 1 if single_buffer else 2
    auto_tm, auto_th = _choose_tiles(m, c, h, x_bytes, w_bytes, out_bytes,
                                     budget, max_tile_m, resident_bufs)
    tile_m = auto_tm if tile_m is None else tile_m
    tile_h = auto_th if tile_h is None else tile_h

    assert h % tile_h == 0, "tile_h must divide the intermediate width"
    assert tile_h == h or tile_h % 128 == 0, "partial H tiles need 128-multiples"

    nm = pl.cdiv(m, tile_m)
    nh = h // tile_h

    weight_bufs = resident_bufs if nh == 1 else 2
    est = _vmem_estimate(tile_m, tile_h, c, x_bytes, w_bytes, weight_bufs, out_bytes)
    vmem_limit = int(min(max(est + (4 << 20), 32 << 20), limit_cap))

    # Constant-index blocks: single-buffer when supported (frees VMEM, esp. v7x).
    if single_buffer:
        def _const_spec(shape, index_map):
            return pl.BlockSpec(shape, index_map, pipeline_mode=pl.Buffered(1))
    else:
        def _const_spec(shape, index_map):
            return pl.BlockSpec(shape, index_map)
    # Weight tiles move along k when nh > 1 -> keep default double buffering then.
    w_spec = _const_spec if nh == 1 else pl.BlockSpec

    in_specs = [
        pl.BlockSpec((tile_m, c), lambda i, k: (i, 0)),   # activation rows
        w_spec((c, tile_h), lambda i, k: (0, k)),          # W1 (gamma folded)
        w_spec((1, tile_h), lambda i, k: (0, k)),          # b1 (beta folded, f32)
        w_spec((tile_h, c), lambda i, k: (k, 0)),          # W2
        _const_spec((1, c), lambda i, k: (0, 0)),          # b2 (f32)
    ]
    out_specs = pl.BlockSpec((tile_m, c), lambda i, k: (i, 0))

    if nh == 1:
        kernel = functools.partial(_transition_kernel, eps=eps)
        scratch = []
    else:
        kernel = functools.partial(_transition_kernel_htiled, eps=eps)
        scratch = [pltpu.VMEM((tile_m, c), jnp.float32)]

    cost = pl.CostEstimate(
        flops=int(4 * m * c * h + 10 * m * c),
        transcendentals=int(m),
        bytes_accessed=int(2 * m * c * x_bytes
                           + (2 * c * h * w_bytes + (h + c) * _F32)
                           * (1 if nh == 1 else nm)),
    )

    out = pl.pallas_call(
        kernel,
        out_shape=jax.ShapeDtypeStruct((m, c), act.dtype),
        grid_spec=pltpu.PrefetchScalarGridSpec(
            num_scalar_prefetch=0,
            grid=(nm, nh),
            in_specs=in_specs,
            out_specs=out_specs,
            scratch_shapes=scratch,
        ),
        compiler_params=pltpu.CompilerParams(
            dimension_semantics=("parallel", "arbitrary"),
            vmem_limit_bytes=vmem_limit,
        ),
        cost_estimate=cost,
    )(x2, w1c, b1f, w2c, b2f)

    return out.reshape(*lead, c)


def transition_pallas(act, mask, ln_gamma, ln_beta, w1, b1, w2, b2, *,
                      compute_dtype=jnp.bfloat16, eps=1e-5,
                      tile_m=None, tile_h=None):
    """Fused Transition forward: LayerNorm -> Linear -> ReLU -> Linear.

    `mask` is accepted but unused (matches the reference PyTorch forward).
    `compute_dtype` is the MXU input dtype (bf16 default); accumulation and
    LayerNorm math are always f32.
    """
    del mask
    return _transition_impl(act, ln_gamma, ln_beta, w1, b1, w2, b2,
                            compute_dtype=jnp.dtype(compute_dtype),
                            eps=float(eps), tile_m=tile_m, tile_h=tile_h,
                            single_buffer=_single_buffer_supported())


# ---------------------------------------------------------------------------
# Parameter construction (mirrors the PyTorch module init) & pure-JAX reference
# ---------------------------------------------------------------------------
def get_initializer_scale(initializer_name, input_shape):
    if initializer_name == "zeros":
        return 0.0
    scale = 1.0
    for channel_dim in input_shape:
        scale /= channel_dim
    if initializer_name == "relu":
        scale *= 2
    return math.sqrt(scale)


def make_transition_params(key, input_dim, num_intermediate_factor=4,
                           zero_init=False, dtype=jnp.float32):
    h = int(input_dim * num_intermediate_factor)
    k1, k2 = jax.random.split(key)
    gamma = jnp.ones((input_dim,), dtype)
    beta = jnp.zeros((input_dim,), dtype)
    w1 = (jax.random.normal(k1, (input_dim, h), dtype)
          * get_initializer_scale("relu", (input_dim,)))
    b1 = jnp.zeros((h,), dtype)
    init2 = "zeros" if zero_init else "linear"   # final_init(global_config)
    w2 = (jax.random.normal(k2, (h, input_dim), dtype)
          * get_initializer_scale(init2, (h,)))
    b2 = jnp.zeros((input_dim,), dtype)
    return gamma, beta, w1, b1, w2, b2


def transition_reference(act, gamma, beta, w1, b1, w2, b2, eps=1e-5):
    mean = jnp.mean(act, axis=-1, keepdims=True)
    var = jnp.mean((act - mean) ** 2, axis=-1, keepdims=True)
    ln = (act - mean) * lax.rsqrt(var + eps) * gamma + beta
    hid = jnp.maximum(
        jnp.einsum("...a,ah->...h", ln, w1,
                   precision=lax.Precision.HIGHEST) + b1, 0.0)
    return jnp.einsum("...h,hc->...c", hid, w2,
                      precision=lax.Precision.HIGHEST) + b2


# ---------------------------------------------------------------------------
# Test
# ---------------------------------------------------------------------------
if __name__ == "__main__":
    key = jax.random.PRNGKey(0)
    k_x, k_p, k_g, k_b, k_b1, k_b2 = jax.random.split(key, 6)

    batch, seq, input_dim = 2, 8, 128
    num_intermediate_factor = 4

    act = jax.random.normal(k_x, (batch, seq, input_dim), dtype=jnp.float32)
    mask = jnp.ones((batch, seq), dtype=jnp.float32)  # unused by the forward

    gamma, beta, w1, b1, w2, b2 = make_transition_params(
        k_p, input_dim, num_intermediate_factor, zero_init=False)
    # Perturb the affine/bias params so the gamma/beta folding is really tested.
    gamma = gamma + 0.1 * jax.random.normal(k_g, gamma.shape, gamma.dtype)
    beta = 0.1 * jax.random.normal(k_b, beta.shape, beta.dtype)
    b1 = 0.1 * jax.random.normal(k_b1, b1.shape, b1.dtype)
    b2 = 0.1 * jax.random.normal(k_b2, b2.shape, b2.dtype)

    ref = transition_reference(act, gamma, beta, w1, b1, w2, b2)

    # 1) Default fast path: bf16 MXU matmuls with f32 accumulation.
    out_bf16 = jax.block_until_ready(
        transition_pallas(act, mask, gamma, beta, w1, b1, w2, b2))
    assert out_bf16.shape == (batch, seq, input_dim), out_bf16.shape
    err_bf16 = float(jnp.max(jnp.abs(out_bf16 - ref)))
    assert jnp.allclose(out_bf16, ref, atol=5e-2, rtol=5e-2), err_bf16

    # 2) f32 compute path: tight check of the fused LN->FF->ReLU->FF math.
    out_f32 = jax.block_until_ready(
        transition_pallas(act, mask, gamma, beta, w1, b1, w2, b2,
                          compute_dtype=jnp.float32))
    err_f32 = float(jnp.max(jnp.abs(out_f32 - ref)))
    assert jnp.allclose(out_f32, ref, atol=1e-3, rtol=1e-3), err_f32

    # 3) Force the H-tiled accumulator path (used for very wide channels).
    out_ht = jax.block_until_ready(
        transition_pallas(act, mask, gamma, beta, w1, b1, w2, b2,
                          compute_dtype=jnp.float32, tile_h=128))
    err_ht = float(jnp.max(jnp.abs(out_ht - ref)))
    assert jnp.allclose(out_ht, ref, atol=1e-3, rtol=1e-3), err_ht

    print("KERNEL_OK")
</pallas_src>

<mosaic_0001>
module attributes {stable_mosaic.version = 11 : i64} {
  func.func @_transition_kernel(%arg0: i32, %arg1: i32, %arg2: memref<8x128xf32, #tpu.memory_space<vmem>>, %arg3: memref<128x512xbf16, #tpu.memory_space<vmem>>, %arg4: memref<1x512xf32, #tpu.memory_space<vmem>>, %arg5: memref<512x128xbf16, #tpu.memory_space<vmem>>, %arg6: memref<1x128xf32, #tpu.memory_space<vmem>>, %arg7: memref<8x128xf32, #tpu.memory_space<vmem>>) attributes {dimension_semantics = [#tpu.dimension_semantics<parallel>, #tpu.dimension_semantics<arbitrary>], iteration_bounds = array<i64: 2, 1>, scalar_prefetch = 0 : i64, scratch_operands = 0 : i64, tpu.core_type = #tpu.core_type<tc>, window_params = [{transform_indices = @transform_0, window_bounds = array<i64: 8, 128>}, {transform_indices = @transform_1, window_bounds = array<i64: 128, 512>}, {transform_indices = @transform_2, window_bounds = array<i64: 1, 512>}, {transform_indices = @transform_3, window_bounds = array<i64: 512, 128>}, {pipeline_mode = #tpu.pipeline_mode<synchronous>, transform_indices = @transform_4, window_bounds = array<i64: 1, 128>}, {transform_indices = @transform_5, window_bounds = array<i64: 8, 128>}]} {
    %c0 = arith.constant 0 : index
    %c0_0 = arith.constant 0 : index
    %0 = vector.load %arg2[%c0, %c0_0] : memref<8x128xf32, #tpu.memory_space<vmem>>, vector<8x128xf32>
    %cst = arith.constant dense<0.000000e+00> : vector<8xf32>
    %1 = vector.multi_reduction <add>, %0, %cst [1] : vector<8x128xf32> to vector<8xf32>
    %2 = vector.shape_cast %1 : vector<8xf32> to vector<8x1xf32>
    %cst_1 = arith.constant 1.280000e+02 : f32
    %3 = vector.broadcast %cst_1 : f32 to vector<8x1xf32>
    %4 = arith.divf %2, %3 : vector<8x1xf32>
    %5 = vector.broadcast %4 : vector<8x1xf32> to vector<8x128xf32>
    %6 = arith.subf %0, %5 : vector<8x128xf32>
    %7 = arith.mulf %6, %6 : vector<8x128xf32>
    %cst_2 = arith.constant dense<0.000000e+00> : vector<8xf32>
    %8 = vector.multi_reduction <add>, %7, %cst_2 [1] : vector<8x128xf32> to vector<8xf32>
    %9 = vector.shape_cast %8 : vector<8xf32> to vector<8x1xf32>
    %cst_3 = arith.constant 1.280000e+02 : f32
    %10 = vector.broadcast %cst_3 : f32 to vector<8x1xf32>
    %11 = arith.divf %9, %10 : vector<8x1xf32>
    %cst_4 = arith.constant 9.99999974E-6 : f32
    %12 = vector.broadcast %cst_4 : f32 to vector<8x1xf32>
    %13 = arith.addf %11, %12 : vector<8x1xf32>
    %14 = math.rsqrt %13 : vector<8x1xf32>
    %15 = vector.broadcast %14 : vector<8x1xf32> to vector<8x128xf32>
    %16 = arith.mulf %6, %15 : vector<8x128xf32>
    %17 = arith.truncf %16 : vector<8x128xf32> to vector<8x128xbf16>
    %c0_5 = arith.constant 0 : index
    %c0_6 = arith.constant 0 : index
    %18 = vector.load %arg3[%c0_5, %c0_6] : memref<128x512xbf16, #tpu.memory_space<vmem>>, vector<128x512xbf16>
    %cst_7 = arith.constant dense<0.000000e+00> : vector<8x512xf32>
    %19 = tpu.matmul %17, %18, %cst_7 {dimension_numbers = #tpu.dot_dimension_numbers<[1], [0], [0], [1], [0, 0, 1, 1], [], []>} : vector<8x128xbf16>, vector<128x512xbf16>, vector<8x512xf32> -> vector<8x512xf32>
    %c0_8 = arith.constant 0 : index
    %c0_9 = arith.constant 0 : index
    %20 = vector.load %arg4[%c0_8, %c0_9] : memref<1x512xf32, #tpu.memory_space<vmem>>, vector<1x512xf32>
    %21 = vector.broadcast %20 : vector<1x512xf32> to vector<8x512xf32>
    %22 = arith.addf %19, %21 : vector<8x512xf32>
    %cst_10 = arith.constant 0.000000e+00 : f32
    %23 = vector.broadcast %cst_10 : f32 to vector<8x512xf32>
    %24 = arith.maximumf %22, %23 : vector<8x512xf32>
    %25 = arith.truncf %24 : vector<8x512xf32> to vector<8x512xbf16>
    %c0_11 = arith.constant 0 : index
    %c0_12 = arith.constant 0 : index
    %26 = vector.load %arg5[%c0_11, %c0_12] : memref<512x128xbf16, #tpu.memory_space<vmem>>, vector<512x128xbf16>
    %cst_13 = arith.constant dense<0.000000e+00> : vector<8x128xf32>
    %27 = tpu.matmul %25, %26, %cst_13 {dimension_numbers = #tpu.dot_dimension_numbers<[1], [0], [0], [1], [0, 0, 1, 1], [], []>} : vector<8x512xbf16>, vector<512x128xbf16>, vector<8x128xf32> -> vector<8x128xf32>
    %c0_14 = arith.constant 0 : index
    %c0_15 = arith.constant 0 : index
    %28 = vector.load %arg6[%c0_14, %c0_15] : memref<1x128xf32, #tpu.memory_space<vmem>>, vector<1x128xf32>
    %29 = vector.broadcast %28 : vector<1x128xf32> to vector<8x128xf32>
    %30 = arith.addf %27, %29 : vector<8x128xf32>
    %c0_16 = arith.constant 0 : index
    %c0_17 = arith.constant 0 : index
    %31 = vector.load %arg7[%c0_16, %c0_17] : memref<8x128xf32, #tpu.memory_space<vmem>>, vector<8x128xf32>
    tpu.vector_store %arg7[%c0_16, %c0_17], %30 {strides = array<i32>} : memref<8x128xf32, #tpu.memory_space<vmem>>, vector<8x128xf32>,
    return
  }
  func.func @transform_0(%arg0: i32, %arg1: i32) -> (i32, i32) {
    %c0_i32 = arith.constant 0 : i32
    %c0_i32_0 = arith.constant 0 : i32
    return %arg0, %c0_i32 : i32, i32
  }
  func.func @transform_1(%arg0: i32, %arg1: i32) -> (i32, i32) {
    %c0_i32 = arith.constant 0 : i32
    %c0_i32_0 = arith.constant 0 : i32
    return %c0_i32, %arg1 : i32, i32
  }
  func.func @transform_2(%arg0: i32, %arg1: i32) -> (i32, i32) {
    %c0_i32 = arith.constant 0 : i32
    %c0_i32_0 = arith.constant 0 : i32
    return %c0_i32, %arg1 : i32, i32
  }
  func.func @transform_3(%arg0: i32, %arg1: i32) -> (i32, i32) {
    %c0_i32 = arith.constant 0 : i32
    %c0_i32_0 = arith.constant 0 : i32
    return %arg1, %c0_i32 : i32, i32
  }
  func.func @transform_4(%arg0: i32, %arg1: i32) -> (i32, i32) {
    %c0_i32 = arith.constant 0 : i32
    %c0_i32_0 = arith.constant 0 : i32
    %c0_i32_1 = arith.constant 0 : i32
    return %c0_i32, %c0_i32_0 : i32, i32
  }
  func.func @transform_5(%arg0: i32, %arg1: i32) -> (i32, i32) {
    %c0_i32 = arith.constant 0 : i32
    %c0_i32_0 = arith.constant 0 : i32
    return %arg0, %c0_i32 : i32, i32
  }
}

</mosaic_0001>

<llo_original>
// kernel: _transition_impl.1
$region0: #{_transition_impl.1}
  #allocation0 [shape = 'u32[]', space=smem, size = 0x4, offset = 0x4, fixed_abs, tag = 'smem constant byte address 0x4 - core index']
  #allocation1 [shape = 'u32[72,128]{1,0:T(1,128)}', space=vmem, size = 0x9000, scoped, tag = 'internal scratch']
  %s0 = inlined_call_operand.vmem [shape: f32[16,128], index: 0, kind: input, shape index: {}]
  %s1 = inlined_call_operand.vmem [shape: bf16[128,512], index: 1, kind: input, shape index: {}]
  %s2 = inlined_call_operand.vmem [shape: f32[1,512], index: 2, kind: input, shape index: {}]
  %s3 = inlined_call_operand.vmem [shape: bf16[512,128], index: 3, kind: input, shape index: {}]
  %s4 = inlined_call_operand.vmem [shape: f32[1,128], index: 4, kind: input, shape index: {}]
  %s5 = inlined_call_operand.hbm [shape: f32[16,128], index: 5, kind: output, shape index: {}]
  %s6 = sld [smem:[#allocation0]]
  $region53: #{_transition_impl.1} parent=0
    _
  %s8 = ssub.s32 1, %s6
  %s9 = scalar_select 0, %s8, %s6
  $region1: #{_transition_impl.1} parent=0
    #allocation2 [shape = 'u8[8192]{0}', space=vmem, size = 0x2000, scoped, tag = 'output window, operand 0']
    #allocation3 [shape = 's32[2]{0}', space=sflag, size = 0x8, scoped, tag = 'scoped memory for _transition_impl.1']
    %10 = vsyncpa [#allocation3], 0
    %s11 = scalar_lea.sflag [#allocation3], 1
    %12 = vsyncpa %s11, 0
    loop: start=0, step=1, limit=4
    $region2: #{_transition_impl.1} parent=1 // loop_pre_header
      _
    $region3: #{_transition_impl.1} parent=1 // loop_header
      %s14 = sphi 0, %s18
      %p15 = scmp.ge.s32.totalorder %s14, 4
      %s21 = sphi 0, %s33
      %s22 = sphi 0, %s29
      %s23 = sphi 0, %s21
      %s24 = sphi 0, %s22
      %s25 = sphi 0, %s23
      %s26 = sphi 0, %s24
      %s36 = sphi 0, %s38
      %s39 = sphi 0, %s36
      %s40 = sphi 0, %s39
      %s56 = sphi 0, %s40
      %s62 = sphi 0, %s64
      %s65 = sphi 0, %s62
      %s66 = sphi 0, %s65
      %s82 = sphi 0, %s66
      %s88 = sphi 0, %s90
      %s91 = sphi 0, %s88
      %s92 = sphi 0, %s91
      %s108 = sphi 0, %s92
      %s114 = sphi 0, %s116
      %s117 = sphi 0, %s114
      %s118 = sphi 0, %s117
      %s134 = sphi 0, %s118
      %s138 = sphi 0, %s138
      %s140 = sphi 0, %s138
      %s141 = sphi 0, %s140
      %s155 = sphi 0, %s141
      %s161 = sphi 0, %s163
      %s164 = sphi 0, %s161
      %s165 = sphi 0, %s164
      %s181 = sphi 0, %s165
    $region4: #{_transition_impl.1} parent=1 // loop_header_branch
      %17 = sbr.rel (%p15) target = $region8
    $region5: #{_transition_impl.1} parent=1 // loop_body
      %s19 = ssub.s32 %s14, 1
      %s20 = ssub.s32 %s14, 2
      %s27 = sadd.s32 1, %s22
      %p28 = scmp.ge.s32.totalorder %s27, 1
      %s29 = scalar_select %p28, 0, %s27
      %s30 = sadd.s32 1, %s21
      %s31 = scalar_select %p28, %s30, %s21
      %p32 = scmp.ge.s32.totalorder %s31, 2
      %s33 = scalar_select %p32, 0, %s31
      %s34 = ssub.s32 %s21, %s33
      %p35 = scmp.eq.s32.totalorder %s34, 0
      %s37 = sadd.s32 %s36, 1
      %s38 = scalar_select %p35, %s36, %s37
      %p41 = pneg %p35
      %p42 = scmp.eq.s32.totalorder %s14, 1
      %p43 = por %p41, %p42
      %p44 = scmp.ne.s32.totalorder %s36, %s39
      %p45 = scmp.eq.s32.totalorder %s14, 0
      %p46 = por %p44, %p45
      %p47 = scmp.ne.s32.totalorder %s36, %s39
      %p48 = scmp.eq.s32.totalorder %s19, 1
      %p49 = por %p47, %p48
      %p50 = scmp.ne.s32.totalorder %s39, %s40
      %p51 = scmp.eq.s32.totalorder %s19, 0
      %p52 = por %p50, %p51
      %p53 = scmp.ne.s32.totalorder %s39, %s40
      %p54 = scmp.eq.s32.totalorder %s20, 1
      %p55 = por %p53, %p54
      %p57 = scmp.ne.s32.totalorder %s40, %s56
      %p58 = scmp.eq.s32.totalorder %s20, 0
      %p59 = por %p57, %p58
      %s60 = ssub.s32 %s22, %s29
      %p61 = scmp.eq.s32.totalorder %s60, 0
      %s63 = sadd.s32 %s62, 1
      %s64 = scalar_select %p61, %s62, %s63
      %p67 = pneg %p61
      %p68 = scmp.eq.s32.totalorder %s14, 1
      %p69 = por %p67, %p68
      %p70 = scmp.ne.s32.totalorder %s62, %s65
      %p71 = scmp.eq.s32.totalorder %s14, 0
      %p72 = por %p70, %p71
      %p73 = scmp.ne.s32.totalorder %s62, %s65
      %p74 = scmp.eq.s32.totalorder %s19, 1
      %p75 = por %p73, %p74
      %p76 = scmp.ne.s32.totalorder %s65, %s66
      %p77 = scmp.eq.s32.totalorder %s19, 0
      %p78 = por %p76, %p77
      %p79 = scmp.ne.s32.totalorder %s65, %s66
      %p80 = scmp.eq.s32.totalorder %s20, 1
      %p81 = por %p79, %p80
      %p83 = scmp.ne.s32.totalorder %s66, %s82
      %p84 = scmp.eq.s32.totalorder %s20, 0
      %p85 = por %p83, %p84
      %s86 = ssub.s32 %s22, %s29
      %p87 = scmp.eq.s32.totalorder %s86, 0
      %s89 = sadd.s32 %s88, 1
      %s90 = scalar_select %p87, %s88, %s89
      %p93 = pneg %p87
      %p94 = scmp.eq.s32.totalorder %s14, 1
      %p95 = por %p93, %p94
      %p96 = scmp.ne.s32.totalorder %s88, %s91
      %p97 = scmp.eq.s32.totalorder %s14, 0
      %p98 = por %p96, %p97
      %p99 = scmp.ne.s32.totalorder %s88, %s91
      %p100 = scmp.eq.s32.totalorder %s19, 1
      %p101 = por %p99, %p100
      %p102 = scmp.ne.s32.totalorder %s91, %s92
      %p103 = scmp.eq.s32.totalorder %s19, 0
      %p104 = por %p102, %p103
      %p105 = scmp.ne.s32.totalorder %s91, %s92
      %p106 = scmp.eq.s32.totalorder %s20, 1
      %p107 = por %p105, %p106
      %p109 = scmp.ne.s32.totalorder %s92, %s108
      %p110 = scmp.eq.s32.totalorder %s20, 0
      %p111 = por %p109, %p110
      %s112 = ssub.s32 %s22, %s29
      %p113 = scmp.eq.s32.totalorder %s112, 0
      %s115 = sadd.s32 %s114, 1
      %s116 = scalar_select %p113, %s114, %s115
      %p119 = pneg %p113
      %p120 = scmp.eq.s32.totalorder %s14, 1
      %p121 = por %p119, %p120
      %p122 = scmp.ne.s32.totalorder %s114, %s117
      %p123 = scmp.eq.s32.totalorder %s14, 0
      %p124 = por %p122, %p123
      %p125 = scmp.ne.s32.totalorder %s114, %s117
      %p126 = scmp.eq.s32.totalorder %s19, 1
      %p127 = por %p125, %p126
      %p128 = scmp.ne.s32.totalorder %s117, %s118
      %p129 = scmp.eq.s32.totalorder %s19, 0
      %p130 = por %p128, %p129
      %p131 = scmp.ne.s32.totalorder %s117, %s118
      %p132 = scmp.eq.s32.totalorder %s20, 1
      %p133 = por %p131, %p132
      %p135 = scmp.ne.s32.totalorder %s118, %s134
      %p136 = scmp.eq.s32.totalorder %s20, 0
      %p137 = por %p135, %p136
      %s139 = sadd.s32 %s138, 1
      %p142 = scmp.eq.s32.totalorder %s14, 1
      %p143 = scmp.ne.s32.totalorder %s138, %s140
      %p144 = scmp.eq.s32.totalorder %s14, 0
      %p145 = por %p143, %p144
      %p146 = scmp.ne.s32.totalorder %s138, %s140
      %p147 = scmp.eq.s32.totalorder %s19, 1
      %p148 = por %p146, %p147
      %p149 = scmp.ne.s32.totalorder %s140, %s141
      %p150 = scmp.eq.s32.totalorder %s19, 0
      %p151 = por %p149, %p150
      %p152 = scmp.ne.s32.totalorder %s140, %s141
      %p153 = scmp.eq.s32.totalorder %s20, 1
      %p154 = por %p152, %p153
      %p156 = scmp.ne.s32.totalorder %s141, %s155
      %p157 = scmp.eq.s32.totalorder %s20, 0
      %p158 = por %p156, %p157
      %s159 = ssub.s32 %s21, %s33
      %p160 = scmp.eq.s32.totalorder %s159, 0
      %s162 = sadd.s32 %s161, 1
      %s163 = scalar_select %p160, %s161, %s162
      %p166 = pneg %p160
      %p167 = scmp.eq.s32.totalorder %s14, 1
      %p168 = por %p166, %p167
      %p169 = scmp.ne.s32.totalorder %s161, %s164
      %p170 = scmp.eq.s32.totalorder %s14, 0
      %p171 = por %p169, %p170
      %p172 = scmp.ne.s32.totalorder %s161, %s164
      %p173 = scmp.eq.s32.totalorder %s19, 1
      %p174 = por %p172, %p173
      %p175 = scmp.ne.s32.totalorder %s164, %s165
      %p176 = scmp.eq.s32.totalorder %s19, 0
      %p177 = por %p175, %p176
      %p178 = scmp.ne.s32.totalorder %s164, %s165
      %p179 = scmp.eq.s32.totalorder %s20, 1
      %p180 = por %p178, %p179
      %p182 = scmp.ne.s32.totalorder %s165, %s181
      %p183 = scmp.eq.s32.totalorder %s20, 0
      %p184 = por %p182, %p183
      %p185 = scmp.le.s32.totalorder 1, %s14
      %p186 = scmp.lt.s32.totalorder %s14, 3
      %p187 = pnand %p185, %p186
      %p188 = pneg %p187
      // Predicated region
      $region9: #{_transition_impl.1} parent=5 // pred_check
        _
      $region10: #{_transition_impl.1} parent=5 // pred_check_branch
        %190 = sbr.rel (%p187) target = $region12
      $region11: #{_transition_impl.1} parent=5 // pred_region
        %s191 = ssub.s32 %s14, 1
        // Predicated region
        $region13: #{_transition_impl.1} parent=11 // pred_check
          %p192 = pneg %p78
        $region14: #{_transition_impl.1} parent=11 // pred_check_branch
          %194 = sbr.rel (%p192) target = $region16
        $region15: #{_transition_impl.1} parent=11 // pred_region
          %s195 = smul.u32 4, %s24
          %p196 = scmp.lt.s32.totalorder %s195, 3
          %s197 = scalar_select %p196, %s195, 3
          %s198 = smul.addr %s197, 4
          %s199 = scalar_lea.vmem %s1, %s198
          %s200 = smul.u32 4, %s24
        $region16: #{_transition_impl.1} parent=11 // pred_fallthru
          _
        // Predicated region
        $region17: #{_transition_impl.1} parent=11 // pred_check
          %p201 = pneg %p104
        $region18: #{_transition_impl.1} parent=11 // pred_check_branch
          %203 = sbr.rel (%p201) target = $region20
        $region19: #{_transition_impl.1} parent=11 // pred_region
          %s204 = smul.u32 4, %s24
          %p205 = scmp.lt.s32.totalorder %s204, 3
          %s206 = scalar_select %p205, %s204, 3
          %s207 = scalar_lea.vmem %s2, %s206
          %s208 = smul.u32 4, %s24
        $region20: #{_transition_impl.1} parent=11 // pred_fallthru
          _
        // Predicated region
        $region21: #{_transition_impl.1} parent=11 // pred_check
          %p209 = pneg %p130
        $region22: #{_transition_impl.1} parent=11 // pred_check_branch
          %211 = sbr.rel (%p209) target = $region24
        $region23: #{_transition_impl.1} parent=11 // pred_region
          %s212 = smul.u32 64, %s24
          %p213 = scmp.lt.s32.totalorder %s212, 63
          %s214 = scalar_select %p213, %s212, 63
          %s215 = smul.addr %s214, 4
          %s216 = scalar_lea.vmem %s3, %s215
          %s217 = smul.u32 64, %s24
        $region24: #{_transition_impl.1} parent=11 // pred_fallthru
          _
        // Predicated region
        $region25: #{_transition_impl.1} parent=11 // pred_check
          %p218 = pneg %p151
        $region26: #{_transition_impl.1} parent=11 // pred_check_branch
          %220 = sbr.rel (%p218) target = $region28
        $region27: #{_transition_impl.1} parent=11 // pred_region
          _
        $region28: #{_transition_impl.1} parent=11 // pred_fallthru
          _
      $region12: #{_transition_impl.1} parent=5 // pred_fallthru
        _
      %p221 = scmp.lt.s32.totalorder %s14, 2
      // Predicated region
      $region29: #{_transition_impl.1} parent=5 // pred_check
        %p222 = pneg %p221
      $region30: #{_transition_impl.1} parent=5 // pred_check_branch
        %224 = sbr.rel (%p222) target = $region32
      $region31: #{_transition_impl.1} parent=5 // pred_region
        // Predicated region
        $region33: #{_transition_impl.1} parent=31 // pred_check
          %p225 = pneg %p46
        $region34: #{_transition_impl.1} parent=31 // pred_check_branch
          %227 = sbr.rel (%p225) target = $region36
        $region35: #{_transition_impl.1} parent=31 // pred_region
          %p228 = scmp.lt.s32.totalorder %s21, 1
          %s229 = scalar_select %p228, %s21, 1
          %s230 = smul.addr %s229, 8
          %s231 = scalar_lea.vmem %s0, %s230
        $region36: #{_transition_impl.1} parent=31 // pred_fallthru
          _
      $region32: #{_transition_impl.1} parent=5 // pred_fallthru
        _
      %p232 = scmp.le.s32.totalorder 1, %s14
      %p233 = scmp.lt.s32.totalorder %s14, 3
      %p234 = pnand %p232, %p233
      %p235 = pneg %p234
      // Predicated region
      $region37: #{_transition_impl.1} parent=5 // pred_check
        _
      $region38: #{_transition_impl.1} parent=5 // pred_check_branch
        %237 = sbr.rel (%p234) target = $region40
      $region39: #{_transition_impl.1} parent=5 // pred_region
        %s238 = ssub.s32 %s14, 1
        %p239 = scmp.lt.s32.totalorder %s23, 1
        %s240 = scalar_select %p239, %s23, 1
        %s241 = smul.addr %s240, 8
        %s242 = scalar_lea.vmem %s0, %s241
        %p243 = pneg %p52
        %p244 = pneg %p49
        %s245 = smul.u32 4, %s24
        %p246 = scmp.lt.s32.totalorder %s245, 3
        %s247 = scalar_select %p246, %s245, 3
        %s248 = smul.addr %s247, 4
        %s249 = scalar_lea.vmem %s1, %s248
        %p250 = pneg %p78
        %p251 = pneg %p75
        %s252 = smul.u32 4, %s24
        %p253 = scmp.lt.s32.totalorder %s252, 3
        %s254 = scalar_select %p253, %s252, 3
        %s255 = scalar_lea.vmem %s2, %s254
        %p256 = pneg %p104
        %p257 = pneg %p101
        %s258 = smul.u32 64, %s24
        %p259 = scmp.lt.s32.totalorder %s258, 63
        %s260 = scalar_select %p259, %s258, 63
        %s261 = smul.addr %s260, 4
        %s262 = scalar_lea.vmem %s3, %s261
        %p263 = pneg %p130
        %p264 = pneg %p127
        %p265 = pneg %p151
        %p266 = pneg %p148
        %p267 = pneg %p177
        %p268 = pneg %p174
        %s269 = sand.u32 %s164, 1
        %s270 = scalar_lea.sflag [#allocation3], %s269
        %s271 = sand.u32 %s164, 1
        %s272 = smul.addr %s271, 8
        %s273 = scalar_lea.vmem [#allocation2], %s272
        %p274 = scmp.lt.s32.totalorder %s23, 1
        %s275 = scalar_select %p274, %s23, 1
        %s276 = smul.addr %s275, 8
        %s277 = scalar_lea.vmem %s0, %s276
        %s278 = smul.u32 4, %s24
        %p279 = scmp.lt.s32.totalorder %s278, 3
        %s280 = scalar_select %p279, %s278, 3
        %s281 = smul.addr %s280, 4
        %s282 = scalar_lea.vmem %s1, %s281
        %s283 = smul.u32 4, %s24
        %s284 = smul.u32 4, %s24
        %p285 = scmp.lt.s32.totalorder %s284, 3
        %s286 = scalar_select %p285, %s284, 3
        %s287 = scalar_lea.vmem %s2, %s286
        %s288 = smul.u32 4, %s24
        %s289 = smul.u32 64, %s24
        %p290 = scmp.lt.s32.totalorder %s289, 63
        %s291 = scalar_select %p290, %s289, 63
        %s292 = smul.addr %s291, 4
        %s293 = scalar_lea.vmem %s3, %s292
        %s294 = smul.u32 64, %s24
        %v295 = vld [vmem:[%s277] sm:$0xff]
        %296 = vadd.xlane.f32.xlu0 %v295
        %v297 = vpop.xlane.xlu0 %296
        %v298 = vrcp.pop 128.0
        %v299 = vmul.f32 128.0, %v298
        %v300 = vsub.f32 1.0, %v299
        %v301 = vmul.f32 %v298, %v300
        %v302 = vadd.f32 %v298, %v301
        %vm303 = vweird.f32 %v298
        %v304 = vsel %vm303, %v298, %v302
        %v305 = vmul.f32 %v297, %v304
        %v306 = vsub.f32 %v295, %v305
        %v307 = vmul.f32 %v306, %v306
        %308 = vadd.xlane.f32.xlu0 %v307
        %v309 = vpop.xlane.xlu0 %308
        %v310 = vmul.f32 %v309, %v304
        %v311 = vadd.f32 %v310, 1e-05
        %v312 = vrsqrt.pop %v311
        %v313 = vmul.f32 %v312, %v311
        %v314 = vmul.f32 %v313, %v312
        %v315 = vmul.f32 0.5, %v314
        %v316 = vsub.f32 1.5, %v315
        %v317 = vmul.f32 %v312, %v316
        %vm318 = vweird.f32 %v311
        %vm319 = vweird.f32 %v312
        %vm320 = vmor %vm318, %vm319
        %v321 = vsel %vm320, %v312, %v317
        %v322 = vmul.f32 %v306, %v321
        %v323 = vpack.c.bf16 %v322, %v322
        %v324 = vld [vmem:[%s282] sm:$0xff]
        %v325 = vld [vmem:[%s282 + $0x8] sm:$0xff]
        %v326 = vld [vmem:[%s282 + $0x10] sm:$0xff]
        %v327 = vld [vmem:[%s282 + $0x18] sm:$0xff]
        %v328 = vld [vmem:[%s282 + $0x20] sm:$0xff]
        %v329 = vld [vmem:[%s282 + $0x28] sm:$0xff]
        %v330 = vld [vmem:[%s282 + $0x30] sm:$0xff]
        %v331 = vld [vmem:[%s282 + $0x38] sm:$0xff]
        %v332 = vld [vmem:[%s282 + $0x40] sm:$0xff]
        %v333 = vld [vmem:[%s282 + $0x48] sm:$0xff]
        %v334 = vld [vmem:[%s282 + $0x50] sm:$0xff]
        %v335 = vld [vmem:[%s282 + $0x58] sm:$0xff]
        %v336 = vld [vmem:[%s282 + $0x60] sm:$0xff]
        %v337 = vld [vmem:[%s282 + $0x68] sm:$0xff]
        %v338 = vld [vmem:[%s282 + $0x70] sm:$0xff]
        %v339 = vld [vmem:[%s282 + $0x78] sm:$0xff]
        %v340 = vld [vmem:[%s282 + $0x80] sm:$0xff]
        %v341 = vld [vmem:[%s282 + $0x88] sm:$0xff]
        %v342 = vld [vmem:[%s282 + $0x90] sm:$0xff]
        %v343 = vld [vmem:[%s282 + $0x98] sm:$0xff]
        %v344 = vld [vmem:[%s282 + $0xa0] sm:$0xff]
        %v345 = vld [vmem:[%s282 + $0xa8] sm:$0xff]
        %v346 = vld [vmem:[%s282 + $0xb0] sm:$0xff]
        %v347 = vld [vmem:[%s282 + $0xb8] sm:$0xff]
        %v348 = vld [vmem:[%s282 + $0xc0] sm:$0xff]
        %v349 = vld [vmem:[%s282 + $0xc8] sm:$0xff]
        %v350 = vld [vmem:[%s282 + $0xd0] sm:$0xff]
        %v351 = vld [vmem:[%s282 + $0xd8] sm:$0xff]
        %v352 = vld [vmem:[%s282 + $0xe0] sm:$0xff]
        %v353 = vld [vmem:[%s282 + $0xe8] sm:$0xff]
        %v354 = vld [vmem:[%s282 + $0xf0] sm:$0xff]
        %v355 = vld [vmem:[%s282 + $0xf8] sm:$0xff]
        %v356 = vld [vmem:[%s287] sm:$0xf]
        %v358 = vperm.slane %v356, 0
        %v359 = vperm.slane %v356, 1
        %v360 = vperm.slane %v356, 2
        %v361 = vperm.slane %v356, 3
        %v398 = vunpack.c.l.b16 %v324
        %v399 = vunpack.c.h.b16 %v324
        %v400 = vunpack.c.l.b16 %v325
        %v401 = vunpack.c.h.b16 %v325
        %v402 = vunpack.c.l.b16 %v326
        %v403 = vunpack.c.h.b16 %v326
        %v404 = vunpack.c.l.b16 %v327
        %v405 = vunpack.c.h.b16 %v327
        %v406 = vunpack.c.l.b16 %v328
        %v407 = vunpack.c.h.b16 %v328
        %v408 = vunpack.c.l.b16 %v329
        %v409 = vunpack.c.h.b16 %v329
        %v410 = vunpack.c.l.b16 %v330
        %v411 = vunpack.c.h.b16 %v330
        %v412 = vunpack.c.l.b16 %v331
        %v413 = vunpack.c.h.b16 %v331
        %v414 = vunpack.c.l.b16 %v332
        %v415 = vunpack.c.h.b16 %v332
        %v416 = vunpack.c.l.b16 %v333
        %v417 = vunpack.c.h.b16 %v333
        %v418 = vunpack.c.l.b16 %v334
        %v419 = vunpack.c.h.b16 %v334
        %v420 = vunpack.c.l.b16 %v335
        %v421 = vunpack.c.h.b16 %v335
        %v422 = vunpack.c.l.b16 %v336
        %v423 = vunpack.c.h.b16 %v336
        %v424 = vunpack.c.l.b16 %v337
        %v425 = vunpack.c.h.b16 %v337
        %v426 = vunpack.c.l.b16 %v338
        %v427 = vunpack.c.h.b16 %v338
        %v428 = vunpack.c.l.b16 %v339
        %v429 = vunpack.c.h.b16 %v339
        %v430 = vunpack.c.l.b16 %v340
        %v431 = vunpack.c.h.b16 %v340
        %v432 = vunpack.c.l.b16 %v341
        %v433 = vunpack.c.h.b16 %v341
        %v434 = vunpack.c.l.b16 %v342
        %v435 = vunpack.c.h.b16 %v342
        %v436 = vunpack.c.l.b16 %v343
        %v437 = vunpack.c.h.b16 %v343
        %v438 = vunpack.c.l.b16 %v344
        %v439 = vunpack.c.h.b16 %v344
        %v440 = vunpack.c.l.b16 %v345
        %v441 = vunpack.c.h.b16 %v345
        %v442 = vunpack.c.l.b16 %v346
        %v443 = vunpack.c.h.b16 %v346
        %v444 = vunpack.c.l.b16 %v347
        %v445 = vunpack.c.h.b16 %v347
        %v446 = vunpack.c.l.b16 %v348
        %v447 = vunpack.c.h.b16 %v348
        %v448 = vunpack.c.l.b16 %v349
        %v449 = vunpack.c.h.b16 %v349
        %v450 = vunpack.c.l.b16 %v350
        %v451 = vunpack.c.h.b16 %v350
        %v452 = vunpack.c.l.b16 %v351
        %v453 = vunpack.c.h.b16 %v351
        %v454 = vunpack.c.l.b16 %v352
        %v455 = vunpack.c.h.b16 %v352
        %v456 = vunpack.c.l.b16 %v353
        %v457 = vunpack.c.h.b16 %v353
        %v458 = vunpack.c.l.b16 %v354
        %v459 = vunpack.c.h.b16 %v354
        %v460 = vunpack.c.l.b16 %v355
        %v461 = vunpack.c.h.b16 %v355
        %v462 = vpack.c.b16 %v402, %v398
        %v463 = vpack.c.b16 %v403, %v399
        %v464 = vpack.c.b16 %v404, %v400
        %v465 = vpack.c.b16 %v405, %v401
        %v466 = vpack.c.b16 %v410, %v406
        %v467 = vpack.c.b16 %v411, %v407
        %v468 = vpack.c.b16 %v412, %v408
        %v469 = vpack.c.b16 %v413, %v409
        %v470 = vpack.c.b16 %v418, %v414
        %v471 = vpack.c.b16 %v419, %v415
        %v472 = vpack.c.b16 %v420, %v416
        %v473 = vpack.c.b16 %v421, %v417
        %v474 = vpack.c.b16 %v426, %v422
        %v475 = vpack.c.b16 %v427, %v423
        %v476 = vpack.c.b16 %v428, %v424
        %v477 = vpack.c.b16 %v429, %v425
        %v478 = vpack.c.b16 %v434, %v430
        %v479 = vpack.c.b16 %v435, %v431
        %v480 = vpack.c.b16 %v436, %v432
        %v481 = vpack.c.b16 %v437, %v433
        %v482 = vpack.c.b16 %v442, %v438
        %v483 = vpack.c.b16 %v443, %v439
        %v484 = vpack.c.b16 %v444, %v440
        %v485 = vpack.c.b16 %v445, %v441
        %v486 = vpack.c.b16 %v450, %v446
        %v487 = vpack.c.b16 %v451, %v447
        %v488 = vpack.c.b16 %v452, %v448
        %v489 = vpack.c.b16 %v453, %v449
        %v490 = vpack.c.b16 %v458, %v454
        %v491 = vpack.c.b16 %v459, %v455
        %v492 = vpack.c.b16 %v460, %v456
        %v493 = vpack.c.b16 %v461, %v457
        %526 = vmatpush.bf16.msra.mxu0 %v490
        %527 = vmatpush.bf16.msra.mxu0 %v486
        %528 = vmatpush.bf16.msra.mxu0 %v482
        %529 = vmatpush.bf16.msra.mxu0 %v478
        %530 = vmatpush.bf16.msra.mxu0 %v474
        %531 = vmatpush.bf16.msra.mxu0 %v470
        %532 = vmatpush.bf16.msra.mxu0 %v466
        %533 = vmatpush.bf16.msra.mxu0 %v462
        %534 = vmatmul.bf16.gmra.mxu0 %v323
        %v535 = vpop.f32.mrf.mxu0
        %v536 = vadd.f32 %v358, %v535
        %v537 = vpop.f32.mrf.mxu0
        %538 = vdwg.mxu0
        %539 = vmatpush.bf16.msra.mxu0 %v491
        %540 = vmatpush.bf16.msra.mxu0 %v487
        %541 = vmatpush.bf16.msra.mxu0 %v483
        %542 = vmatpush.bf16.msra.mxu0 %v479
        %543 = vmatpush.bf16.msra.mxu0 %v475
        %544 = vmatpush.bf16.msra.mxu0 %v471
        %545 = vmatpush.bf16.msra.mxu0 %v467
        %546 = vmatpush.bf16.msra.mxu0 %v463
        %547 = vmatmul.bf16.gmra.mxu0 %v323
        %v548 = vpop.f32.mrf.mxu0
        %v549 = vadd.f32 %v359, %v548
        %v550 = vpop.f32.mrf.mxu0
        %551 = vdwg.mxu0
        %552 = vmatpush.bf16.msra.mxu0 %v492
        %553 = vmatpush.bf16.msra.mxu0 %v488
        %554 = vmatpush.bf16.msra.mxu0 %v484
        %555 = vmatpush.bf16.msra.mxu0 %v480
        %556 = vmatpush.bf16.msra.mxu0 %v476
        %557 = vmatpush.bf16.msra.mxu0 %v472
        %558 = vmatpush.bf16.msra.mxu0 %v468
        %559 = vmatpush.bf16.msra.mxu0 %v464
        %560 = vmatmul.bf16.gmra.mxu0 %v323
        %v561 = vpop.f32.mrf.mxu0
        %v562 = vadd.f32 %v360, %v561
        %v563 = vpop.f32.mrf.mxu0
        %564 = vdwg.mxu0
        %565 = vmatpush.bf16.msra.mxu0 %v493
        %566 = vmatpush.bf16.msra.mxu0 %v489
        %567 = vmatpush.bf16.msra.mxu0 %v485
        %568 = vmatpush.bf16.msra.mxu0 %v481
        %569 = vmatpush.bf16.msra.mxu0 %v477
        %570 = vmatpush.bf16.msra.mxu0 %v473
        %571 = vmatpush.bf16.msra.mxu0 %v469
        %572 = vmatpush.bf16.msra.mxu0 %v465
        %573 = vmatmul.bf16.gmra.mxu0 %v323
        %v574 = vpop.f32.mrf.mxu0
        %v575 = vadd.f32 %v361, %v574
        %v576 = vpop.f32.mrf.mxu0
        %577 = vdwg.mxu0
        %v578 = vmax.f32 %v536, 0.0
        %v579 = vmax.f32 %v549, 0.0
        %v580 = vmax.f32 %v562, 0.0
        %v581 = vmax.f32 %v575, 0.0
        %v582 = vpack.c.bf16 %v578, %v578
        %v583 = vpack.c.bf16 %v579, %v579
        %v584 = vpack.c.bf16 %v580, %v580
        %v585 = vpack.c.bf16 %v581, %v581
        %v586 = vld [vmem:[%s293] sm:$0xf]
        %v587 = vld [vmem:[%s293 + $0x4] sm:$0xf]
        %v588 = vld [vmem:[%s293 + $0x8] sm:$0xf]
        %v589 = vld [vmem:[%s293 + $0xc] sm:$0xf]
        %v590 = vld [vmem:[%s293 + $0x10] sm:$0xf]
        %v591 = vld [vmem:[%s293 + $0x14] sm:$0xf]
        %v592 = vld [vmem:[%s293 + $0x18] sm:$0xf]
        %v593 = vld [vmem:[%s293 + $0x1c] sm:$0xf]
        %v594 = vld [vmem:[%s293 + $0x20] sm:$0xf]
        %v595 = vld [vmem:[%s293 + $0x24] sm:$0xf]
        %v596 = vld [vmem:[%s293 + $0x28] sm:$0xf]
        %v597 = vld [vmem:[%s293 + $0x2c] sm:$0xf]
        %v598 = vld [vmem:[%s293 + $0x30] sm:$0xf]
        %v599 = vld [vmem:[%s293 + $0x34] sm:$0xf]
        %v600 = vld [vmem:[%s293 + $0x38] sm:$0xf]
        %v601 = vld [vmem:[%s293 + $0x3c] sm:$0xf]
        %v602 = vld [vmem:[%s293 + $0x40] sm:$0xf]
        %v603 = vld [vmem:[%s293 + $0x44] sm:$0xf]
        %v604 = vld [vmem:[%s293 + $0x48] sm:$0xf]
        %v605 = vld [vmem:[%s293 + $0x4c] sm:$0xf]
        %v606 = vld [vmem:[%s293 + $0x50] sm:$0xf]
        %v607 = vld [vmem:[%s293 + $0x54] sm:$0xf]
        %v608 = vld [vmem:[%s293 + $0x58] sm:$0xf]
        %v609 = vld [vmem:[%s293 + $0x5c] sm:$0xf]
        %v610 = vld [vmem:[%s293 + $0x60] sm:$0xf]
        %v611 = vld [vmem:[%s293 + $0x64] sm:$0xf]
        %v612 = vld [vmem:[%s293 + $0x68] sm:$0xf]
        %v613 = vld [vmem:[%s293 + $0x6c] sm:$0xf]
        %v614 = vld [vmem:[%s293 + $0x70] sm:$0xf]
        %v615 = vld [vmem:[%s293 + $0x74] sm:$0xf]
        %v616 = vld [vmem:[%s293 + $0x78] sm:$0xf]
        %v617 = vld [vmem:[%s293 + $0x7c] sm:$0xf]
        %v618 = vld [vmem:[%s293 + $0x80] sm:$0xf]
        %v619 = vld [vmem:[%s293 + $0x84] sm:$0xf]
        %v620 = vld [vmem:[%s293 + $0x88] sm:$0xf]
        %v621 = vld [vmem:[%s293 + $0x8c] sm:$0xf]
        %v622 = vld [vmem:[%s293 + $0x90] sm:$0xf]
        %v623 = vld [vmem:[%s293 + $0x94] sm:$0xf]
        %v624 = vld [vmem:[%s293 + $0x98] sm:$0xf]
        %v625 = vld [vmem:[%s293 + $0x9c] sm:$0xf]
        %v626 = vld [vmem:[%s293 + $0xa0] sm:$0xf]
        %v627 = vld [vmem:[%s293 + $0xa4] sm:$0xf]
        %v628 = vld [vmem:[%s293 + $0xa8] sm:$0xf]
        %v629 = vld [vmem:[%s293 + $0xac] sm:$0xf]
        %v630 = vld [vmem:[%s293 + $0xb0] sm:$0xf]
        %v631 = vld [vmem:[%s293 + $0xb4] sm:$0xf]
        %v632 = vld [vmem:[%s293 + $0xb8] sm:$0xf]
        %v633 = vld [vmem:[%s293 + $0xbc] sm:$0xf]
        %v634 = vld [vmem:[%s293 + $0xc0] sm:$0xf]
        %v635 = vld [vmem:[%s293 + $0xc4] sm:$0xf]
        %v636 = vld [vmem:[%s293 + $0xc8] sm:$0xf]
        %v637 = vld [vmem:[%s293 + $0xcc] sm:$0xf]
        %v638 = vld [vmem:[%s293 + $0xd0] sm:$0xf]
        %v639 = vld [vmem:[%s293 + $0xd4] sm:$0xf]
        %v640 = vld [vmem:[%s293 + $0xd8] sm:$0xf]
        %v641 = vld [vmem:[%s293 + $0xdc] sm:$0xf]
        %v642 = vld [vmem:[%s293 + $0xe0] sm:$0xf]
        %v643 = vld [vmem:[%s293 + $0xe4] sm:$0xf]
        %v644 = vld [vmem:[%s293 + $0xe8] sm:$0xf]
        %v645 = vld [vmem:[%s293 + $0xec] sm:$0xf]
        %v646 = vld [vmem:[%s293 + $0xf0] sm:$0xf]
        %v647 = vld [vmem:[%s293 + $0xf4] sm:$0xf]
        %v648 = vld [vmem:[%s293 + $0xf8] sm:$0xf]
        %v649 = vld [vmem:[%s293 + $0xfc] sm:$0xf]
        %v650 = vld [vmem:[%s4] sm:$0x1]
        %v652 = vperm.slane %v650, 0
        %v718 = vunpack.c.l.b16 %v586
        %v719 = vunpack.c.l.b16 %v587
        %v720 = vunpack.c.l.b16 %v588
        %v721 = vunpack.c.l.b16 %v589
        %v722 = vunpack.c.l.b16 %v590
        %v723 = vunpack.c.l.b16 %v591
        %v724 = vunpack.c.l.b16 %v592
        %v725 = vunpack.c.l.b16 %v593
        %v726 = vunpack.c.l.b16 %v594
        %v727 = vunpack.c.l.b16 %v595
        %v728 = vunpack.c.l.b16 %v596
        %v729 = vunpack.c.l.b16 %v597
        %v730 = vunpack.c.l.b16 %v598
        %v731 = vunpack.c.l.b16 %v599
        %v732 = vunpack.c.l.b16 %v600
        %v733 = vunpack.c.l.b16 %v601
        %v734 = vunpack.c.l.b16 %v602
        %v735 = vunpack.c.l.b16 %v603
        %v736 = vunpack.c.l.b16 %v604
        %v737 = vunpack.c.l.b16 %v605
        %v738 = vunpack.c.l.b16 %v606
        %v739 = vunpack.c.l.b16 %v607
        %v740 = vunpack.c.l.b16 %v608
        %v741 = vunpack.c.l.b16 %v609
        %v742 = vunpack.c.l.b16 %v610
        %v743 = vunpack.c.l.b16 %v611
        %v744 = vunpack.c.l.b16 %v612
        %v745 = vunpack.c.l.b16 %v613
        %v746 = vunpack.c.l.b16 %v614
        %v747 = vunpack.c.l.b16 %v615
        %v748 = vunpack.c.l.b16 %v616
        %v749 = vunpack.c.l.b16 %v617
        %v750 = vunpack.c.l.b16 %v618
        %v751 = vunpack.c.l.b16 %v619
        %v752 = vunpack.c.l.b16 %v620
        %v753 = vunpack.c.l.b16 %v621
        %v754 = vunpack.c.l.b16 %v622
        %v755 = vunpack.c.l.b16 %v623
        %v756 = vunpack.c.l.b16 %v624
        %v757 = vunpack.c.l.b16 %v625
        %v758 = vunpack.c.l.b16 %v626
        %v759 = vunpack.c.l.b16 %v627
        %v760 = vunpack.c.l.b16 %v628
        %v761 = vunpack.c.l.b16 %v629
        %v762 = vunpack.c.l.b16 %v630
        %v763 = vunpack.c.l.b16 %v631
        %v764 = vunpack.c.l.b16 %v632
        %v765 = vunpack.c.l.b16 %v633
        %v766 = vunpack.c.l.b16 %v634
        %v767 = vunpack.c.l.b16 %v635
        %v768 = vunpack.c.l.b16 %v636
        %v769 = vunpack.c.l.b16 %v637
        %v770 = vunpack.c.l.b16 %v638
        %v771 = vunpack.c.l.b16 %v639
        %v772 = vunpack.c.l.b16 %v640
        %v773 = vunpack.c.l.b16 %v641
        %v774 = vunpack.c.l.b16 %v642
        %v775 = vunpack.c.l.b16 %v643
        %v776 = vunpack.c.l.b16 %v644
        %v777 = vunpack.c.l.b16 %v645
        %v778 = vunpack.c.l.b16 %v646
        %v779 = vunpack.c.l.b16 %v647
        %v780 = vunpack.c.l.b16 %v648
        %v781 = vunpack.c.l.b16 %v649
        %v782 = vpack.c.b16 %v719, %v718
        %v783 = vpack.c.b16 %v721, %v720
        %v784 = vpack.c.b16 %v723, %v722
        %v785 = vpack.c.b16 %v725, %v724
        %v786 = vpack.c.b16 %v727, %v726
        %v787 = vpack.c.b16 %v729, %v728
        %v788 = vpack.c.b16 %v731, %v730
        %v789 = vpack.c.b16 %v733, %v732
        %v790 = vpack.c.b16 %v735, %v734
        %v791 = vpack.c.b16 %v737, %v736
        %v792 = vpack.c.b16 %v739, %v738
        %v793 = vpack.c.b16 %v741, %v740
        %v794 = vpack.c.b16 %v743, %v742
        %v795 = vpack.c.b16 %v745, %v744
        %v796 = vpack.c.b16 %v747, %v746
        %v797 = vpack.c.b16 %v749, %v748
        %v798 = vpack.c.b16 %v751, %v750
        %v799 = vpack.c.b16 %v753, %v752
        %v800 = vpack.c.b16 %v755, %v754
        %v801 = vpack.c.b16 %v757, %v756
        %v802 = vpack.c.b16 %v759, %v758
        %v803 = vpack.c.b16 %v761, %v760
        %v804 = vpack.c.b16 %v763, %v762
        %v805 = vpack.c.b16 %v765, %v764
        %v806 = vpack.c.b16 %v767, %v766
        %v807 = vpack.c.b16 %v769, %v768
        %v808 = vpack.c.b16 %v771, %v770
        %v809 = vpack.c.b16 %v773, %v772
        %v810 = vpack.c.b16 %v775, %v774
        %v811 = vpack.c.b16 %v777, %v776
        %v812 = vpack.c.b16 %v779, %v778
        %v813 = vpack.c.b16 %v781, %v780
        %846 = vmatpush.bf16.msra.mxu0 %v789
        %847 = vmatpush.bf16.msra.mxu0 %v788
        %848 = vmatpush.bf16.msra.mxu0 %v787
        %849 = vmatpush.bf16.msra.mxu0 %v786
        %850 = vmatpush.bf16.msra.mxu0 %v785
        %851 = vmatpush.bf16.msra.mxu0 %v784
        %852 = vmatpush.bf16.msra.mxu0 %v783
        %853 = vmatpush.bf16.msra.mxu0 %v782
        %854 = vmatmul.bf16.gmra.mxu0 %v582
        %v855 = vpop.f32.mrf.mxu0
        %v856 = vadd.f32 %v652, %v855
        %v857 = vpop.f32.mrf.mxu0
        %858 = vdwg.mxu0
        %859 = vmatpush.bf16.msra.mxu0 %v797
        %860 = vmatpush.bf16.msra.mxu0 %v796
        %861 = vmatpush.bf16.msra.mxu0 %v795
        %862 = vmatpush.bf16.msra.mxu0 %v794
        %863 = vmatpush.bf16.msra.mxu0 %v793
        %864 = vmatpush.bf16.msra.mxu0 %v792
        %865 = vmatpush.bf16.msra.mxu0 %v791
        %866 = vmatpush.bf16.msra.mxu0 %v790
        %867 = vmatmul.bf16.gmra.mxu0 %v583
        %v868 = vpop.f32.mrf.mxu0
        %v869 = vadd.f32 %v856, %v868
        %v870 = vpop.f32.mrf.mxu0
        %871 = vdwg.mxu0
        %872 = vmatpush.bf16.msra.mxu0 %v805
        %873 = vmatpush.bf16.msra.mxu0 %v804
        %874 = vmatpush.bf16.msra.mxu0 %v803
        %875 = vmatpush.bf16.msra.mxu0 %v802
        %876 = vmatpush.bf16.msra.mxu0 %v801
        %877 = vmatpush.bf16.msra.mxu0 %v800
        %878 = vmatpush.bf16.msra.mxu0 %v799
        %879 = vmatpush.bf16.msra.mxu0 %v798
        %880 = vmatmul.bf16.gmra.mxu0 %v584
        %v881 = vpop.f32.mrf.mxu0
        %v882 = vadd.f32 %v869, %v881
        %v883 = vpop.f32.mrf.mxu0
        %884 = vdwg.mxu0
        %885 = vmatpush.bf16.msra.mxu0 %v813
        %886 = vmatpush.bf16.msra.mxu0 %v812
        %887 = vmatpush.bf16.msra.mxu0 %v811
        %888 = vmatpush.bf16.msra.mxu0 %v810
        %889 = vmatpush.bf16.msra.mxu0 %v809
        %890 = vmatpush.bf16.msra.mxu0 %v808
        %891 = vmatpush.bf16.msra.mxu0 %v807
        %892 = vmatpush.bf16.msra.mxu0 %v806
        %893 = vmatmul.bf16.gmra.mxu0 %v585
        %v894 = vpop.f32.mrf.mxu0
        %v895 = vadd.f32 %v882, %v894
        %v896 = vpop.f32.mrf.mxu0
        %897 = vdwg.mxu0
        %898 = vst [vmem:[%s273] sm:$0xff] %v895
        %s899 = sand.u32 %s164, 1
        %s900 = scalar_lea.sflag [#allocation3], %s899
        %s901 = sand.u32 %s164, 1
        %s902 = smul.addr %s901, 8
        %s903 = scalar_lea.vmem [#allocation2], %s902
        // Predicated region
        $region41: #{_transition_impl.1} parent=39 // pred_check
          %p904 = pneg %p174
        $region42: #{_transition_impl.1} parent=39 // pred_check_branch
          %906 = sbr.rel (%p904) target = $region44
        $region43: #{_transition_impl.1} parent=39 // pred_region
          %908 = vsyncadd %s900, 0
          %s909 = smul.addr %s23, 8
          %s910 = scalar_lea.hbm %s5, %s909
          %s912 = sshll.u32 %s903, 4
          %s913 = int_to_ptr.vmem [resolvable:$true] %s912
          %s914 = sshll.u32 %s910, 4
          %s915 = int_to_ptr.hbm [resolvable:$true] %s914
          %917 = dma.vmem_to_hbm [thread:$0]  %s913, 128, %s915, %s900
        $region44: #{_transition_impl.1} parent=39 // pred_fallthru
          _
      $region40: #{_transition_impl.1} parent=5 // pred_fallthru
        _
      %p918 = scmp.le.s32.totalorder 2, %s14
      // Predicated region
      $region45: #{_transition_impl.1} parent=5 // pred_check
        %p919 = pneg %p918
      $region46: #{_transition_impl.1} parent=5 // pred_check_branch
        %921 = sbr.rel (%p919) target = $region48
      $region47: #{_transition_impl.1} parent=5 // pred_region
        %s922 = ssub.s32 %s14, 2
        // Predicated region
        $region49: #{_transition_impl.1} parent=47 // pred_check
          %p923 = pneg %p180
        $region50: #{_transition_impl.1} parent=47 // pred_check_branch
          %925 = sbr.rel (%p923) target = $region52
        $region51: #{_transition_impl.1} parent=47 // pred_region
          %s926 = sand.u32 %s165, 1
          %s927 = scalar_lea.sflag [#allocation3], %s926
          %s928 = sand.u32 %s165, 1
          %s929 = smul.addr %s928, 8
          %s930 = scalar_lea.vmem [#allocation2], %s929
          %932 = dma.done %s927, 128
        $region52: #{_transition_impl.1} parent=47 // pred_fallthru
          _
      $region48: #{_transition_impl.1} parent=5 // pred_fallthru
        _
    $region6: #{_transition_impl.1} parent=1 // loop_footer
      %s18 = sadd.s32 1, %s14
    $region7: #{_transition_impl.1} parent=1 // loop_footer_branch
      %13 = sbr.rel target = $region3
    $region8: #{_transition_impl.1} parent=1 // loop_exit
      _
    %933 = vsyncpa [#allocation3], 1
    %s934 = scalar_lea.sflag [#allocation3], 1
    %935 = vsyncpa %s934, 1

</llo_original>
